<compile_context>
chip_gen: v5e
topology: v5e:2x2
jax: 0.10.0
libtpu: 0.0.40
codegen_flags: <defaults>
</compile_context>

<pallas_src>
import functools

import jax
import jax.numpy as jnp
from jax.experimental import pallas as pl
from jax.experimental.pallas import tpu as pltpu


_VMEM_LIMIT_BYTES = 48 * 1024 * 1024  # safe on v5e/v6e (128 MiB) and v7x (64 MiB)


# ------------------------------ tile selection ------------------------------ #

def _pick_sublane_tile(dim, prefs=(512, 256, 128, 64, 32, 16, 8)):
    """Largest preferred multiple-of-8 tile that evenly divides `dim`;
    fall back to the full dimension (full-extent blocks are always legal)."""
    for p in prefs:
        if dim >= p and dim % p == 0:
            return p
    return dim


def _pick_lane_tile(dim, prefs=(512, 256, 128)):
    """Largest preferred multiple-of-128 tile that evenly divides `dim`;
    fall back to the full dimension (always legal for the lane axis)."""
    for p in prefs:
        if dim >= p and dim % p == 0:
            return p
    return dim


# ----------------------------- tiled linear kernel -------------------------- #

def _linear_kernel(x_ref, w_ref, b_ref, o_ref, acc_ref):
    # grid = (M//tm, N//tn, K//tk); K is the reduction axis (last, "arbitrary").
    @pl.when(pl.program_id(2) == 0)
    def _():
        acc_ref[...] = jnp.zeros_like(acc_ref)

    # bf16 MXU operands, f32 accumulation (full-rate MXU on v6e/v7x).
    acc_ref[...] += jnp.dot(x_ref[...].astype(jnp.bfloat16),
                            w_ref[...].astype(jnp.bfloat16),
                            preferred_element_type=jnp.float32)

    @pl.when(pl.program_id(2) == pl.num_programs(2) - 1)
    def _():
        # Bias added once (in f32), on the final K step only.
        o_ref[...] = (acc_ref[...] + b_ref[...].astype(jnp.float32)
                      ).astype(o_ref.dtype)


def _linear(x, w, b, out_dtype=None):
    """y = x @ w + b with MXU tiling and double-buffered HBM pipelining."""
    M, K = x.shape
    N = w.shape[1]
    out_dtype = out_dtype if out_dtype is not None else x.dtype
    tm = _pick_sublane_tile(M)
    tn = _pick_lane_tile(N)
    tk = _pick_lane_tile(K)
    grid = (M // tm, N // tn, K // tk)

    return pl.pallas_call(
        _linear_kernel,
        out_shape=jax.ShapeDtypeStruct((M, N), out_dtype),
        grid=grid,
        in_specs=[
            pl.BlockSpec((tm, tk), lambda i, j, k: (i, k)),
            pl.BlockSpec((tk, tn), lambda i, j, k: (k, j)),
            pl.BlockSpec((1, tn), lambda i, j, k: (0, j)),
        ],
        out_specs=pl.BlockSpec((tm, tn), lambda i, j, k: (i, j)),
        scratch_shapes=[pltpu.VMEM((tm, tn), jnp.float32)],
        compiler_params=pltpu.CompilerParams(
            dimension_semantics=("parallel", "parallel", "arbitrary"),
            vmem_limit_bytes=_VMEM_LIMIT_BYTES),
    )(x, w, b.reshape(1, N))


# ------------------------- flash attention kernel --------------------------- #

def _flash_attn_kernel(q_ref, k_ref, v_ref, m_ref, o_ref,
                       m_sc, l_sc, acc_sc, *, scale):
    # grid = (B*H, S//tq, S//tkv); KV axis last ("arbitrary"), others "parallel".
    ki = pl.program_id(2)

    @pl.when(ki == 0)
    def _():
        m_sc[...] = jnp.full_like(m_sc, -jnp.inf)
        l_sc[...] = jnp.zeros_like(l_sc)
        acc_sc[...] = jnp.zeros_like(acc_sc)

    # bf16 MXU operands; 1/sqrt(Dh) folded into q; contract last dims (no k.T copy).
    q = (q_ref[0] * scale).astype(jnp.bfloat16)      # (tq, Dh)
    k = k_ref[0].astype(jnp.bfloat16)                # (tkv, Dh)
    s = jax.lax.dot_general(q, k, (((1,), (1,)), ((), ())),
                            preferred_element_type=jnp.float32)
    s = s + m_ref[...].astype(jnp.float32)           # additive mask tile (tq, tkv)

    # Online softmax; all elementwise math in f32 (no bf16 VPU/EUP on v5e).
    # Note: fully-masked rows give a near-uniform softmax (not NaN like PyTorch
    # float masks); irrelevant for causal masks.
    m_prev = m_sc[...]
    m_new = jnp.maximum(m_prev, jnp.max(s, axis=-1, keepdims=True))
    alpha = jnp.exp(m_prev - m_new)
    p = jnp.exp(s - m_new)
    l_sc[...] = alpha * l_sc[...] + jnp.sum(p, axis=-1, keepdims=True)
    acc_sc[...] = alpha * acc_sc[...] + jnp.dot(
        p.astype(jnp.bfloat16), v_ref[0].astype(jnp.bfloat16),
        preferred_element_type=jnp.float32)
    m_sc[...] = m_new

    @pl.when(ki == pl.num_programs(2) - 1)
    def _():
        o_ref[0] = (acc_sc[...] *
                    pl.reciprocal(l_sc[...], approx=True)).astype(o_ref.dtype)


def _flash_attention(q, k, v, mask, out_dtype):
    """q, k, v: (B*H, S, Dh) head-major; mask: (S, S) additive f32."""
    BH, S, Dh = q.shape
    scale = 1.0 / float(Dh) ** 0.5
    tq = _pick_sublane_tile(S, prefs=(256, 128, 64, 32, 16, 8))
    tkv = _pick_lane_tile(S)      # mask lane dim must be a 128-multiple or full S
    grid = (BH, S // tq, S // tkv)

    return pl.pallas_call(
        functools.partial(_flash_attn_kernel, scale=scale),
        out_shape=jax.ShapeDtypeStruct((BH, S, Dh), out_dtype),
        grid=grid,
        in_specs=[
            pl.BlockSpec((1, tq, Dh), lambda bh, qi, ki: (bh, qi, 0)),
            pl.BlockSpec((1, tkv, Dh), lambda bh, qi, ki: (bh, ki, 0)),
            pl.BlockSpec((1, tkv, Dh), lambda bh, qi, ki: (bh, ki, 0)),
            pl.BlockSpec((tq, tkv), lambda bh, qi, ki: (qi, ki)),
        ],
        out_specs=pl.BlockSpec((1, tq, Dh), lambda bh, qi, ki: (bh, qi, 0)),
        scratch_shapes=[
            pltpu.VMEM((tq, 1), jnp.float32),    # running max
            pltpu.VMEM((tq, 1), jnp.float32),    # running denom
            pltpu.VMEM((tq, Dh), jnp.float32),   # running PV accumulator
        ],
        compiler_params=pltpu.CompilerParams(
            dimension_semantics=("parallel", "parallel", "arbitrary"),
            vmem_limit_bytes=_VMEM_LIMIT_BYTES),
    )(q, k, v, mask)


# ------------------------------ module wrapper ------------------------------ #

def init_masked_attention_params(key, embed_dim):
    """Deterministic synthetic parameters matching nn.MultiheadAttention shapes.

    Stored pre-transposed so the kernels compute x @ W:
      w_in  : (E, 3E)  == in_proj_weight.T   (columns ordered [q | k | v])
      b_in  : (3E,)    == in_proj_bias
      w_out : (E, E)   == out_proj.weight.T
      b_out : (E,)     == out_proj.bias
    """
    k1, k2, k3, k4 = jax.random.split(key, 4)
    e = embed_dim
    scale = 1.0 / jnp.sqrt(jnp.float32(e))
    w_in = jax.random.normal(k1, (e, 3 * e), jnp.float32) * scale
    b_in = jax.random.normal(k2, (3 * e,), jnp.float32) * 0.01
    w_out = jax.random.normal(k3, (e, e), jnp.float32) * scale
    b_out = jax.random.normal(k4, (e,), jnp.float32) * 0.01
    return w_in, b_in, w_out, b_out


def masked_attention(x, mask, params, num_heads):
    """Forward pass of MaskedAttention.  x: (B, S, E), mask: (S, S) additive float."""
    B, S, E = x.shape
    assert E % num_heads == 0
    Dh = E // num_heads
    w_in, b_in, w_out, b_out = params

    # Input projection -> (B*S, 3E), emitted in bf16 (halves HBM traffic downstream).
    qkv = _linear(x.reshape(B * S, E), w_in, b_in, out_dtype=jnp.bfloat16)

    # Head-major split (one HBM transpose): lane-clean (B*H, S, Dh) operands.
    qkv = qkv.reshape(B, S, 3, num_heads, Dh).transpose(2, 0, 3, 1, 4)
    qkv = qkv.reshape(3, B * num_heads, S, Dh)
    q, k, v = qkv[0], qkv[1], qkv[2]

    # Flash-style masked attention -> (B*H, S, Dh) in bf16.
    ctx = _flash_attention(q, k, v, mask.astype(jnp.float32), jnp.bfloat16)

    # Merge heads (one HBM transpose) and project out in the input dtype.
    ctx = ctx.reshape(B, num_heads, S, Dh).transpose(0, 2, 1, 3).reshape(B * S, E)
    out = _linear(ctx, w_out, b_out, out_dtype=x.dtype)
    return out.reshape(B, S, E)


# ---------------------------- pure-JAX reference ---------------------------- #

def _reference(x, mask, params, num_heads):
    B, S, E = x.shape
    Dh = E // num_heads
    w_in, b_in, w_out, b_out = params
    qkv = x.reshape(B * S, E) @ w_in + b_in
    qkv = qkv.reshape(B, S, 3, num_heads, Dh)
    q = qkv[:, :, 0].transpose(0, 2, 1, 3)
    k = qkv[:, :, 1].transpose(0, 2, 1, 3)
    v = qkv[:, :, 2].transpose(0, 2, 1, 3)
    s = jnp.einsum("bhqd,bhkd->bhqk", q, k) / jnp.sqrt(jnp.float32(Dh)) + mask
    p = jax.nn.softmax(s, axis=-1)
    ctx = jnp.einsum("bhqk,bhkd->bhqd", p, v)
    ctx = ctx.transpose(0, 2, 1, 3).reshape(B * S, E)
    return (ctx @ w_out + b_out).reshape(B, S, E)


# ----------------------------------- main ----------------------------------- #

if __name__ == "__main__":
    B, S, E, H = 2, 8, 32, 4

    key = jax.random.PRNGKey(0)
    kx, kp = jax.random.split(key)

    x = jax.random.normal(kx, (B, S, E), jnp.float32)

    # Causal additive float mask (same convention as a PyTorch float attn_mask).
    causal = jnp.tril(jnp.ones((S, S), jnp.bool_))
    mask = jnp.where(causal, 0.0, -1e9).astype(jnp.float32)

    params = init_masked_attention_params(kp, E)

    out = masked_attention(x, mask, params, num_heads=H)
    jax.block_until_ready(out)

    assert out.shape == (B, S, E)
    ref = _reference(x, mask, params, H)
    assert bool(jnp.all(jnp.isfinite(out)))
    # Kernel uses bf16 MXU operands (f32 accumulation) per the perf review, so
    # compare against the f32 reference at bf16-appropriate tolerance.
    assert bool(jnp.allclose(out, ref, rtol=2e-2, atol=2e-2))
    print("KERNEL_OK")
</pallas_src>

<mosaic_0001>
module attributes {stable_mosaic.version = 11 : i64} {
  func.func @_linear_kernel(%arg0: i32, %arg1: i32, %arg2: i32, %arg3: memref<16x32xf32, #tpu.memory_space<vmem>>, %arg4: memref<32x96xf32, #tpu.memory_space<vmem>>, %arg5: memref<1x96xf32, #tpu.memory_space<vmem>>, %arg6: memref<16x96xbf16, #tpu.memory_space<vmem>>, %arg7: memref<16x96xf32, #tpu.memory_space<vmem>>) attributes {dimension_semantics = [#tpu.dimension_semantics<parallel>, #tpu.dimension_semantics<parallel>, #tpu.dimension_semantics<arbitrary>], iteration_bounds = array<i64: 1, 1, 1>, scalar_prefetch = 0 : i64, scratch_operands = 1 : i64, tpu.core_type = #tpu.core_type<tc>, window_params = [{transform_indices = @transform_0, window_bounds = array<i64: 16, 32>}, {transform_indices = @transform_1, window_bounds = array<i64: 32, 96>}, {transform_indices = @transform_2, window_bounds = array<i64: 1, 96>}, {transform_indices = @transform_3, window_bounds = array<i64: 16, 96>}]} {
    %c0_i32 = arith.constant 0 : i32
    %0 = arith.cmpi eq, %arg2, %c0_i32 : i32
    %1 = arith.extui %0 : i1 to i32
    %c0_i32_0 = arith.constant 0 : i32
    %2 = arith.cmpi ne, %1, %c0_i32_0 : i32
    scf.if %2 {
      %cst_10 = arith.constant 0.000000e+00 : f32
      %14 = vector.broadcast %cst_10 : f32 to vector<16x96xf32>
      %c0_11 = arith.constant 0 : index
      %c0_12 = arith.constant 0 : index
      %15 = vector.load %arg7[%c0_11, %c0_12] : memref<16x96xf32, #tpu.memory_space<vmem>>, vector<16x96xf32>
      tpu.vector_store %arg7[%c0_11, %c0_12], %14 {strides = array<i32>} : memref<16x96xf32, #tpu.memory_space<vmem>>, vector<16x96xf32>,
    } else {
    }
    %c0 = arith.constant 0 : index
    %c0_1 = arith.constant 0 : index
    %3 = vector.load %arg7[%c0, %c0_1] : memref<16x96xf32, #tpu.memory_space<vmem>>, vector<16x96xf32>
    %c0_2 = arith.constant 0 : index
    %c0_3 = arith.constant 0 : index
    %4 = vector.load %arg3[%c0_2, %c0_3] : memref<16x32xf32, #tpu.memory_space<vmem>>, vector<16x32xf32>
    %5 = arith.truncf %4 : vector<16x32xf32> to vector<16x32xbf16>
    %c0_4 = arith.constant 0 : index
    %c0_5 = arith.constant 0 : index
    %6 = vector.load %arg4[%c0_4, %c0_5] : memref<32x96xf32, #tpu.memory_space<vmem>>, vector<32x96xf32>
    %7 = arith.truncf %6 : vector<32x96xf32> to vector<32x96xbf16>
    %cst = arith.constant dense<0.000000e+00> : vector<16x96xf32>
    %8 = tpu.matmul %5, %7, %cst {dimension_numbers = #tpu.dot_dimension_numbers<[1], [0], [0], [1], [0, 0, 1, 1], [], []>} : vector<16x32xbf16>, vector<32x96xbf16>, vector<16x96xf32> -> vector<16x96xf32>
    %9 = arith.addf %3, %8 : vector<16x96xf32>
    %c0_6 = arith.constant 0 : index
    %c0_7 = arith.constant 0 : index
    %10 = vector.load %arg7[%c0_6, %c0_7] : memref<16x96xf32, #tpu.memory_space<vmem>>, vector<16x96xf32>
    tpu.vector_store %arg7[%c0_6, %c0_7], %9 {strides = array<i32>} : memref<16x96xf32, #tpu.memory_space<vmem>>, vector<16x96xf32>,
    %c0_i32_8 = arith.constant 0 : i32
    %11 = arith.cmpi eq, %arg2, %c0_i32_8 : i32
    %12 = arith.extui %11 : i1 to i32
    %c0_i32_9 = arith.constant 0 : i32
    %13 = arith.cmpi ne, %12, %c0_i32_9 : i32
    scf.if %13 {
      %c0_10 = arith.constant 0 : index
      %c0_11 = arith.constant 0 : index
      %14 = vector.load %arg7[%c0_10, %c0_11] : memref<16x96xf32, #tpu.memory_space<vmem>>, vector<16x96xf32>
      %c0_12 = arith.constant 0 : index
      %c0_13 = arith.constant 0 : index
      %15 = vector.load %arg5[%c0_12, %c0_13] : memref<1x96xf32, #tpu.memory_space<vmem>>, vector<1x96xf32>
      %16 = vector.broadcast %15 : vector<1x96xf32> to vector<16x96xf32>
      %17 = arith.addf %14, %16 : vector<16x96xf32>
      %18 = arith.truncf %17 : vector<16x96xf32> to vector<16x96xbf16>
      %c0_14 = arith.constant 0 : index
      %c0_15 = arith.constant 0 : index
      %19 = vector.load %arg6[%c0_14, %c0_15] : memref<16x96xbf16, #tpu.memory_space<vmem>>, vector<16x96xbf16>
      tpu.vector_store %arg6[%c0_14, %c0_15], %18 {strides = array<i32>} : memref<16x96xbf16, #tpu.memory_space<vmem>>, vector<16x96xbf16>,
    } else {
    }
    return
  }
  func.func @transform_0(%arg0: i32, %arg1: i32, %arg2: i32) -> (i32, i32) {
    %c0_i32 = arith.constant 0 : i32
    return %arg0, %arg2 : i32, i32
  }
  func.func @transform_1(%arg0: i32, %arg1: i32, %arg2: i32) -> (i32, i32) {
    %c0_i32 = arith.constant 0 : i32
    return %arg2, %arg1 : i32, i32
  }
  func.func @transform_2(%arg0: i32, %arg1: i32, %arg2: i32) -> (i32, i32) {
    %c0_i32 = arith.constant 0 : i32
    %c0_i32_0 = arith.constant 0 : i32
    return %c0_i32, %arg1 : i32, i32
  }
  func.func @transform_3(%arg0: i32, %arg1: i32, %arg2: i32) -> (i32, i32) {
    %c0_i32 = arith.constant 0 : i32
    return %arg0, %arg1 : i32, i32
  }
}

</mosaic_0001>

<llo_original>
// kernel: tpu_custom_call.1
$region0: #{tpu_custom_call.1}
  #allocation0 [shape = 'u32[]', space=smem, size = 0x4, offset = 0x4, fixed_abs, tag = 'smem constant byte address 0x4 - core index']
  #allocation1 [shape = 'u32[72,128]{1,0:T(1,128)}', space=vmem, size = 0x9000, scoped, tag = 'internal scratch']
  #allocation2 [shape = 'f32[16,96]{1,0:T(8,128)}', space=vmem, size = 0x2000, scoped, tag = 'scratch operand']
  %s0 = inlined_call_operand.hbm [shape: f32[16,32], index: 0, kind: input, shape index: {}]
  %s1 = inlined_call_operand.hbm [shape: f32[32,96], index: 1, kind: input, shape index: {}]
  %s2 = inlined_call_operand.vmem [shape: f32[1,96], index: 2, kind: input, shape index: {}]
  %s3 = inlined_call_operand.hbm [shape: bf16[16,96], index: 3, kind: output, shape index: {}]
  %s4 = sld [smem:[#allocation0]]
  $region38: #{tpu_custom_call.1} parent=0
    _
  %s6 = ssub.s32 1, %s4
  %s7 = scalar_select 0, %s6, %s4
  $region1: #{tpu_custom_call.1} parent=0
    #allocation3 [shape = 'u8[8192]{0}', space=vmem, size = 0x2000, scoped, tag = 'input window, operand 0, single buffered']
    #allocation4 [shape = 's32[1]{0}', space=sflag, size = 0x4, scoped, tag = 'scoped memory for tpu_custom_call.1']
    #allocation5 [shape = 's32[1]{0}', space=sflag, size = 0x4, scoped, tag = 'scoped memory for tpu_custom_call.1']
    #allocation6 [shape = 'u8[16384]{0}', space=vmem, size = 0x4000, scoped, tag = 'input window, operand 1, single buffered']
    #allocation7 [shape = 's32[1]{0}', space=sflag, size = 0x4, scoped, tag = 'scoped memory for tpu_custom_call.1']
    #allocation8 [shape = 'u8[4096]{0}', space=vmem, size = 0x1000, scoped, tag = 'output window, operand 0, single buffered']
    %8 = vsyncpa [#allocation4], 0
    %9 = vsyncpa [#allocation7], 0
    %10 = vsyncpa [#allocation5], 0
    // Predicated region
    $region2: #{tpu_custom_call.1} parent=1 // pred_check
      _
    $region3: #{tpu_custom_call.1} parent=1 // pred_check_branch
      %12 = sbr.rel (0) target = $region5
    $region4: #{tpu_custom_call.1} parent=1 // pred_region
      %14 = vsyncadd [#allocation4], 0
      %s15 = sshll.u32 %s0, 4
      %s16 = int_to_ptr.hbm [resolvable:$true] %s15
      %s17 = sshll.u32 [#allocation3], 4
      %s18 = int_to_ptr.vmem [resolvable:$true] %s17
      %23 = dma.hbm_to_vmem [thread:$0]  %s16, 256, %s18, [#allocation4], 128, 128, 8
    $region5: #{tpu_custom_call.1} parent=1 // pred_fallthru
      _
    // Predicated region
    $region6: #{tpu_custom_call.1} parent=1 // pred_check
      _
    $region7: #{tpu_custom_call.1} parent=1 // pred_check_branch
      %25 = sbr.rel (0) target = $region9
    $region8: #{tpu_custom_call.1} parent=1 // pred_region
      %27 = vsyncadd [#allocation7], 0
      %s28 = sshll.u32 %s1, 4
      %s29 = int_to_ptr.hbm [resolvable:$true] %s28
      %s30 = sshll.u32 [#allocation6], 4
      %s31 = int_to_ptr.vmem [resolvable:$true] %s30
      %36 = dma.hbm_to_vmem [thread:$0]  %s29, 512, %s31, [#allocation7], 128, 128, 8
    $region9: #{tpu_custom_call.1} parent=1 // pred_fallthru
      _
    // Predicated region
    $region10: #{tpu_custom_call.1} parent=1 // pred_check
      _
    $region11: #{tpu_custom_call.1} parent=1 // pred_check_branch
      %38 = sbr.rel (0) target = $region13
    $region12: #{tpu_custom_call.1} parent=1 // pred_region
      _
    $region13: #{tpu_custom_call.1} parent=1 // pred_fallthru
      _
    // Predicated region
    $region14: #{tpu_custom_call.1} parent=1 // pred_check
      _
    $region15: #{tpu_custom_call.1} parent=1 // pred_check_branch
      %40 = sbr.rel (0) target = $region17
    $region16: #{tpu_custom_call.1} parent=1 // pred_region
      %42 = dma.done [#allocation4], 256
    $region17: #{tpu_custom_call.1} parent=1 // pred_fallthru
      _
    // Predicated region
    $region18: #{tpu_custom_call.1} parent=1 // pred_check
      _
    $region19: #{tpu_custom_call.1} parent=1 // pred_check_branch
      %44 = sbr.rel (0) target = $region21
    $region20: #{tpu_custom_call.1} parent=1 // pred_region
      %46 = dma.done [#allocation7], 512
    $region21: #{tpu_custom_call.1} parent=1 // pred_fallthru
      _
    %p48 = scmp.eq.s32.totalorder 0, 0
    // Predicated region
    $region22: #{tpu_custom_call.1} parent=1 // pred_check
      %p49 = pneg %p48
    $region23: #{tpu_custom_call.1} parent=1 // pred_check_branch
      %51 = sbr.rel (%p49) target = $region25
    $region24: #{tpu_custom_call.1} parent=1 // pred_region
      %vm52 = vcmask 785408
      %53 = vst.msk [vmem:[#allocation2] sm:$0xff] %vm52, 0.0
      %54 = vst.msk [vmem:[#allocation2 + $0x8] sm:$0xff] %vm52, 0.0
    $region25: #{tpu_custom_call.1} parent=1 // pred_fallthru
      _
    %v55 = vld [vmem:[#allocation2] sm:$0xff]
    %v56 = vld [vmem:[#allocation2 + $0x8] sm:$0xff]
    %v57 = vld [vmem:[#allocation3] sm:$0xff]
    %v58 = vld [vmem:[#allocation3 + $0x8] sm:$0xff]
    %v59 = vpack.c.bf16 %v58, %v57
    %v60 = vld [vmem:[#allocation6] sm:$0xff]
    %v61 = vld [vmem:[#allocation6 + $0x8] sm:$0xff]
    %v62 = vld [vmem:[#allocation6 + $0x10] sm:$0xff]
    %v63 = vld [vmem:[#allocation6 + $0x18] sm:$0xff]
    %v64 = vpack.c.bf16 %v61, %v60
    %v65 = vpack.c.bf16 %v63, %v62
    %vm66 = vcmask 261120
    %v68 = vsel %vm66, %v59, 0
    %70 = vmatpush.bf16.msra.mxu0 0
    %71 = vmatpush.bf16.msra.mxu0 0
    %72 = vmatpush.bf16.msra.mxu0 0
    %73 = vmatpush.bf16.msra.mxu0 0
    %74 = vmatpush.bf16.msra.mxu0 0
    %75 = vmatpush.bf16.msra.mxu0 0
    %76 = vmatpush.bf16.msra.mxu0 %v65
    %77 = vmatpush.bf16.msra.mxu0 %v64
    %78 = vmatmul.bf16.gmra.mxu0 %v68
    %v79 = vpop.f32.mrf.mxu0
    %v80 = vadd.f32 0.0, %v79
    %v81 = vpop.f32.mrf.mxu0
    %v82 = vadd.f32 0.0, %v81
    %83 = vdwg.mxu0
    %v84 = vadd.f32 %v55, %v80
    %v85 = vadd.f32 %v56, %v82
    %vm86 = vcmask 785408
    %87 = vst.msk [vmem:[#allocation2] sm:$0xff] %vm86, %v84
    %88 = vst.msk [vmem:[#allocation2 + $0x8] sm:$0xff] %vm86, %v85
    // Predicated region
    $region26: #{tpu_custom_call.1} parent=1 // pred_check
      %p89 = pneg %p48
    $region27: #{tpu_custom_call.1} parent=1 // pred_check_branch
      %91 = sbr.rel (%p89) target = $region29
    $region28: #{tpu_custom_call.1} parent=1 // pred_region
      %v92 = vld [vmem:[#allocation2] sm:$0xff]
      %v93 = vld [vmem:[#allocation2 + $0x8] sm:$0xff]
      %v94 = vld [vmem:[%s2] sm:$0x1]
      %v96 = vperm.slane %v94, 0
      %v98 = vadd.f32 %v92, %v96
      %v99 = vadd.f32 %v93, %v96
      %v100 = vpack.c.bf16 %v98, %v98
      %v101 = vpack.c.bf16 %v99, %v99
      %vm102 = vcmask 781312
      %103 = vst.msk [vmem:[#allocation8] sm:$0xf] %vm102, %v100
      %104 = vst.msk [vmem:[#allocation8 + $0x4] sm:$0xf] %vm102, %v101
    $region29: #{tpu_custom_call.1} parent=1 // pred_fallthru
      _
    // Predicated region
    $region30: #{tpu_custom_call.1} parent=1 // pred_check
      _
    $region31: #{tpu_custom_call.1} parent=1 // pred_check_branch
      %106 = sbr.rel (0) target = $region33
    $region32: #{tpu_custom_call.1} parent=1 // pred_region
      %108 = vsyncadd [#allocation5], 0
      %s109 = sshll.u32 [#allocation8], 4
      %s110 = int_to_ptr.vmem [resolvable:$true] %s109
      %s111 = sshll.u32 %s3, 4
      %s112 = int_to_ptr.hbm [resolvable:$true] %s111
      %117 = dma.vmem_to_hbm [thread:$0]  %s110, 128, %s112, [#allocation5], 64, 64, 4
    $region33: #{tpu_custom_call.1} parent=1 // pred_fallthru
      _
    // Predicated region
    $region34: #{tpu_custom_call.1} parent=1 // pred_check
      _
    $region35: #{tpu_custom_call.1} parent=1 // pred_check_branch
      %119 = sbr.rel (0) target = $region37
    $region36: #{tpu_custom_call.1} parent=1 // pred_region
      %121 = dma.done [#allocation5], 128
    $region37: #{tpu_custom_call.1} parent=1 // pred_fallthru
      _
    %122 = vsyncpa [#allocation4], 1
    %123 = vsyncpa [#allocation7], 1
    %124 = vsyncpa [#allocation5], 1

</llo_original>
